<compile_context>
chip_gen: v7x
topology: tpu7x:2x2x1
jax: 0.10.0
libtpu: 0.0.40
codegen_flags: <defaults>
</compile_context>

<pallas_src>
import math

import jax
import jax.numpy as jnp
from jax.experimental import pallas as pl
from jax.experimental.pallas import tpu as pltpu


def _diag_linear_kernel(x_ref, d_ref, o_ref):
    # Per-column scale (== x @ diag(d)); runs entirely on the VPU.
    o_ref[...] = (x_ref[...] * d_ref[...]).astype(o_ref.dtype)


def _round_up(a: int, b: int) -> int:
    return ((a + b - 1) // b) * b


def _vmem_budget():
    """Returns (target_tile_bytes, usable_vmem_bytes) derived from hardware."""
    try:
        cap = int(pltpu.get_tpu_info().vmem_capacity_bytes)
    except Exception:
        cap = 64 << 20  # conservative fallback: smallest (v7x per-TC) VMEM
    budget = (cap * 7) // 10          # leave headroom for compiler scratch
    # 16 MiB tiles on 128 MiB chips (v5e/v6e), 8 MiB on 64 MiB chips (v7x).
    target_tile = (16 << 20) if cap >= (128 << 20) else (8 << 20)
    return target_tile, budget


def _choose_col_tile(size: int, itemsize: int, quantum: int, budget: int) -> int:
    """Column tile: full width unless a minimum-height strip blows the budget."""
    lane = 128
    # Cost of a quantum-row strip, double-buffered input + output.
    if 4 * quantum * size * itemsize <= budget or size % lane != 0:
        return size
    cols = budget // (4 * quantum * itemsize)
    if cols >= 512:
        cols = (cols // 512) * 512        # lane-dense, 512-lane multiples
    else:
        cols = max(lane, (cols // lane) * lane)
    return min(cols, size)


def _choose_row_tile(batch: int, col_tile: int, itemsize: int, quantum: int,
                     target_tile_bytes: int, budget: int,
                     d_block_bytes: int) -> int:
    row_bytes = col_tile * itemsize
    total_bytes = batch * row_bytes
    if total_bytes <= (2 << 20) or batch <= quantum:
        # Small input: one block; pipelining / dual-TC sharding buys nothing.
        tile_rows = batch
    else:
        # Enough steps to hit the per-step tile target, rounded up to an even
        # count so both v7x TensorCores get near-equal work (no ragged tail
        # leaving one TC idle).
        steps = max(2, pl.cdiv(total_bytes, target_tile_bytes))
        steps += steps % 2
        tile_rows = _round_up(pl.cdiv(batch, steps), quantum)
        if tile_rows >= batch:
            tile_rows = max(quantum, _round_up(batch // 2, quantum))
            if tile_rows >= batch:
                tile_rows = batch
    # Shrink the tile (never under-provision the VMEM request) until
    # double-buffered x + out tiles plus the diag block fit the budget.
    while tile_rows > quantum and (
            4 * tile_rows * row_bytes + 2 * d_block_bytes > budget):
        tile_rows = max(quantum, _round_up(tile_rows // 2, quantum))
    return tile_rows


def diagonal_linear(x: jax.Array, diag: jax.Array) -> jax.Array:
    """Computes x @ diag(diag) (DiagonalLinear.forward) with a Pallas kernel.

    x:    (..., size)   -- any number of leading dims (flattened internally)
    diag: (size,)
    """
    *lead, size = x.shape
    assert diag.shape == (size,)
    out_shape = x.shape

    # Promotion policy: compute in x's dtype (diag cast in the wrapper).
    diag = diag.astype(x.dtype)

    batch = 1
    for d in lead:
        batch *= int(d)
    x2 = x.reshape(batch, size)

    # Lane-density fold: make the kernel's last dim a multiple of 128 by
    # folding k rows per block row and tiling diag k times (layout only).
    lane = 128
    k = lane // math.gcd(size, lane)
    if k > 1 and batch % k == 0 and batch >= k:
        x2 = x2.reshape(batch // k, k * size)
        d2 = jnp.tile(diag, k).reshape(1, k * size)
        n_rows, n_cols = batch // k, k * size
    else:
        # Note: if size % 128 != 0 and batch % k != 0 stores stay masked
        # (correct, just slower); full-extent blocks keep lowering legal.
        d2 = diag.reshape(1, size)
        n_rows, n_cols = batch, size

    itemsize = jnp.dtype(x.dtype).itemsize
    quantum = max(8, 32 // itemsize)          # sublane quantum for this dtype
    target_tile, budget = _vmem_budget()

    col_tile = _choose_col_tile(n_cols, itemsize, quantum, budget)
    d_block_bytes = col_tile * itemsize
    tile_rows = _choose_row_tile(n_rows, col_tile, itemsize, quantum,
                                 target_tile, budget, d_block_bytes)

    grid = (pl.cdiv(n_rows, tile_rows), pl.cdiv(n_cols, col_tile))

    tile_bytes = tile_rows * col_tile * itemsize
    # Request what the chosen tiles actually need (+ headroom); the tile
    # chooser already guarantees this fits the derived hardware budget.
    needed = 4 * tile_bytes + 2 * d_block_bytes + (4 << 20)
    vmem_limit = int(min(max(needed, 16 << 20), budget + (4 << 20)))

    cost = pl.CostEstimate(
        flops=n_rows * n_cols,
        transcendentals=0,
        bytes_accessed=2 * n_rows * n_cols * itemsize + n_cols * itemsize,
    )

    out = pl.pallas_call(
        _diag_linear_kernel,
        out_shape=jax.ShapeDtypeStruct((n_rows, n_cols), x.dtype),
        grid_spec=pltpu.PrefetchScalarGridSpec(
            num_scalar_prefetch=0,
            grid=grid,
            in_specs=[
                pl.BlockSpec((tile_rows, col_tile), lambda i, j: (i, j)),
                # Constant row-block index: diag is DMA'd once per column tile.
                pl.BlockSpec((1, col_tile), lambda i, j: (0, j)),
            ],
            out_specs=pl.BlockSpec((tile_rows, col_tile), lambda i, j: (i, j)),
        ),
        compiler_params=pltpu.CompilerParams(
            # Both axes independent -> shards across v7x's two TensorCores.
            dimension_semantics=("parallel", "parallel"),
            vmem_limit_bytes=vmem_limit,
        ),
        cost_estimate=cost,
    )(x2, d2)

    return out.reshape(out_shape)


if __name__ == "__main__":
    # Small shapes consistent with the module: 3-D x (wrapper flattens the
    # leading dims), size=32 (< 128 -> exercises the lane-density fold).
    batch0, batch1, size = 2, 8, 32

    key = jax.random.PRNGKey(0)
    kx, kd = jax.random.split(key)
    x = jax.random.normal(kx, (batch0, batch1, size), dtype=jnp.float32)

    # Module __init__ uses torch.ones(size); perturb deterministically so the
    # per-column scaling is observable.
    diag = jnp.ones((size,), dtype=jnp.float32) + 0.01 * jax.random.normal(
        kd, (size,), dtype=jnp.float32)

    out = diagonal_linear(x, diag)
    out = jax.block_until_ready(out)

    # Reference: exact PyTorch semantics x @ diag_matrix.
    ref = x @ jnp.diag(diag)
    assert out.shape == ref.shape
    assert jnp.allclose(out, ref, atol=1e-6, rtol=1e-6), "mismatch vs reference"

    print("KERNEL_OK")
</pallas_src>

<mosaic_0001>
module attributes {stable_mosaic.version = 11 : i64} {
  func.func @_diag_linear_kernel(%arg0: i32, %arg1: i32, %arg2: memref<4x128xf32, #tpu.memory_space<vmem>>, %arg3: memref<1x128xf32, #tpu.memory_space<vmem>>, %arg4: memref<4x128xf32, #tpu.memory_space<vmem>>) attributes {dimension_semantics = [#tpu.dimension_semantics<parallel>, #tpu.dimension_semantics<parallel>], iteration_bounds = array<i64: 1, 1>, scalar_prefetch = 0 : i64, scratch_operands = 0 : i64, tpu.core_type = #tpu.core_type<tc>, window_params = [{transform_indices = @transform_0, window_bounds = array<i64: 4, 128>}, {transform_indices = @transform_1, window_bounds = array<i64: 1, 128>}, {transform_indices = @transform_2, window_bounds = array<i64: 4, 128>}]} {
    %c0 = arith.constant 0 : index
    %c0_0 = arith.constant 0 : index
    %0 = vector.load %arg2[%c0, %c0_0] : memref<4x128xf32, #tpu.memory_space<vmem>>, vector<4x128xf32>
    %c0_1 = arith.constant 0 : index
    %c0_2 = arith.constant 0 : index
    %1 = vector.load %arg3[%c0_1, %c0_2] : memref<1x128xf32, #tpu.memory_space<vmem>>, vector<1x128xf32>
    %2 = vector.broadcast %1 : vector<1x128xf32> to vector<4x128xf32>
    %3 = arith.mulf %0, %2 : vector<4x128xf32>
    %c0_3 = arith.constant 0 : index
    %c0_4 = arith.constant 0 : index
    %4 = vector.load %arg4[%c0_3, %c0_4] : memref<4x128xf32, #tpu.memory_space<vmem>>, vector<4x128xf32>
    tpu.vector_store %arg4[%c0_3, %c0_4], %3 {strides = array<i32>} : memref<4x128xf32, #tpu.memory_space<vmem>>, vector<4x128xf32>,
    return
  }
  func.func @transform_0(%arg0: i32, %arg1: i32) -> (i32, i32) {
    %c0_i32 = arith.constant 0 : i32
    return %arg0, %arg1 : i32, i32
  }
  func.func @transform_1(%arg0: i32, %arg1: i32) -> (i32, i32) {
    %c0_i32 = arith.constant 0 : i32
    %c0_i32_0 = arith.constant 0 : i32
    return %c0_i32, %arg1 : i32, i32
  }
  func.func @transform_2(%arg0: i32, %arg1: i32) -> (i32, i32) {
    %c0_i32 = arith.constant 0 : i32
    return %arg0, %arg1 : i32, i32
  }
}

</mosaic_0001>

<llo_original>
// kernel: tpu_custom_call.1
$region0: #{tpu_custom_call.1}
  #allocation0 [shape = 'u32[]', space=smem, size = 0x4, offset = 0x4, fixed_abs, tag = 'smem constant byte address 0x4 - core index']
  #allocation1 [shape = 'u32[144,128]{1,0:T(1,128)}', space=vmem, size = 0x12000, scoped, tag = 'internal scratch']
  %s0 = inlined_call_operand.hbm [shape: f32[4,128], index: 0, kind: input, shape index: {}]
  %s1 = inlined_call_operand.vmem [shape: f32[1,128], index: 1, kind: input, shape index: {}]
  %s2 = inlined_call_operand.hbm [shape: f32[4,128], index: 2, kind: output, shape index: {}]
  %s3 = sld [smem:[#allocation0]]
  $region22: #{tpu_custom_call.1} parent=0
    _
  %s5 = ssub.s32 1, %s3
  %s6 = scalar_select 0, %s5, %s3
  $region1: #{tpu_custom_call.1} parent=0
    #allocation2 [shape = 'u8[2048]{0}', space=vmem, size = 0x800, scoped, tag = 'input window, operand 0, single buffered']
    #allocation3 [shape = 's32[1]{0}', space=sflag, size = 0x4, scoped, tag = 'scoped memory for tpu_custom_call.1']
    #allocation4 [shape = 's32[1]{0}', space=sflag, size = 0x4, scoped, tag = 'scoped memory for tpu_custom_call.1']
    #allocation5 [shape = 'u8[2048]{0}', space=vmem, size = 0x800, scoped, tag = 'output window, operand 0, single buffered']
    %7 = vsyncpa [#allocation3], 0
    %8 = vsyncpa [#allocation4], 0
    // Predicated region
    $region2: #{tpu_custom_call.1} parent=1 // pred_check
      _
    $region3: #{tpu_custom_call.1} parent=1 // pred_check_branch
      %10 = sbr.rel (0) target = $region5
    $region4: #{tpu_custom_call.1} parent=1 // pred_region
      %s12 = ssub.s32 64, 64
      %13 = vsyncadd [#allocation3], %s12
      %s15 = sshll.u32 [#allocation2], 4
      %s16 = int_to_ptr.vmem [resolvable:$true] %s15
      %18 = dma.hbm_to_vmem [thread:$0]  %s0, 64, %s16, [#allocation3]
    $region5: #{tpu_custom_call.1} parent=1 // pred_fallthru
      _
    // Predicated region
    $region6: #{tpu_custom_call.1} parent=1 // pred_check
      _
    $region7: #{tpu_custom_call.1} parent=1 // pred_check_branch
      %20 = sbr.rel (0) target = $region9
    $region8: #{tpu_custom_call.1} parent=1 // pred_region
      _
    $region9: #{tpu_custom_call.1} parent=1 // pred_fallthru
      _
    // Predicated region
    $region10: #{tpu_custom_call.1} parent=1 // pred_check
      _
    $region11: #{tpu_custom_call.1} parent=1 // pred_check_branch
      %22 = sbr.rel (0) target = $region13
    $region12: #{tpu_custom_call.1} parent=1 // pred_region
      %23 = dma.done [#allocation3], 64
    $region13: #{tpu_custom_call.1} parent=1 // pred_fallthru
      _
    %v24 = vld [vmem:[#allocation2] sm:$0xf]
    %v25 = vld [vmem:[%s1] sm:$0x1]
    %v27 = vlaneseq
    %v28 = vshrl.u32 %v27, 7
    %v29 = vsub.s32 0, %v28
    %v30 = vrot.slane %v25, %v29
    %v32 = vmul.f32 %v24, %v30
    %33 = vst [vmem:[#allocation5] sm:$0xf] %v32
    // Predicated region
    $region14: #{tpu_custom_call.1} parent=1 // pred_check
      _
    $region15: #{tpu_custom_call.1} parent=1 // pred_check_branch
      %35 = sbr.rel (0) target = $region17
    $region16: #{tpu_custom_call.1} parent=1 // pred_region
      %s37 = ssub.s32 64, 64
      %38 = vsyncadd [#allocation4], %s37
      %s40 = sshll.u32 [#allocation5], 4
      %s41 = int_to_ptr.vmem [resolvable:$true] %s40
      %43 = dma.vmem_to_hbm [thread:$0]  %s41, 64, %s2, [#allocation4]
    $region17: #{tpu_custom_call.1} parent=1 // pred_fallthru
      _
    // Predicated region
    $region18: #{tpu_custom_call.1} parent=1 // pred_check
      _
    $region19: #{tpu_custom_call.1} parent=1 // pred_check_branch
      %45 = sbr.rel (0) target = $region21
    $region20: #{tpu_custom_call.1} parent=1 // pred_region
      %46 = dma.done [#allocation4], 64
    $region21: #{tpu_custom_call.1} parent=1 // pred_fallthru
      _
    %47 = vsyncpa [#allocation3], 1
    %48 = vsyncpa [#allocation4], 1

</llo_original>
